<compile_context>
chip_gen: v5e
topology: v5e:2x2
jax: 0.10.0
libtpu: 0.0.40
codegen_flags: <defaults>
</compile_context>

<pallas_src>
import jax
import jax.numpy as jnp
from jax.experimental import pallas as pl
from jax.experimental.pallas import tpu as pltpu


def _round_up(v, m):
    return ((v + m - 1) // m) * m


def _categorical_kernel(x_ref, w_ref, b_ref, logits_ref, probs_ref):
    """One batch tile: z = x @ W + b; logits = log_softmax(z); probs = softmax(z)."""
    # x streams from HBM in f32 and is cast to the matmul dtype here (no extra
    # wrapper-side HBM convert pass over x).
    x = x_ref[...].astype(w_ref.dtype)                 # (TB, D) bf16
    w = w_ref[...]                                     # (D,  N) bf16, VMEM-resident
    b = b_ref[...]                                     # (1,  N) f32,  VMEM-resident

    # Canonical (D, N)-stationary MXU contraction, f32 accumulation.
    z = jnp.dot(x, w, preferred_element_type=jnp.float32) + b   # (TB, N) f32

    # Numerically stable log-softmax / softmax with a single EUP exp pass.
    m = jnp.max(z, axis=-1, keepdims=True)
    p = jnp.exp(z - m)
    l = jnp.sum(p, axis=-1, keepdims=True)
    logits_ref[...] = (z - m) - jnp.log(l)
    probs_ref[...] = (p / l).astype(probs_ref.dtype)


def _choose_batch_tile(B, D, N, in_itemsize, vmem_budget_bytes):
    """Largest multiple-of-8 batch tile whose *physical* VMEM footprint fits the budget."""
    lane_D = _round_up(D, 128)          # lane dim padded to 128
    lane_N = _round_up(N, 128)
    # Resident, single-buffered operands: bf16 weight (D, N) with second-minor padded
    # to 16 (bf16 sublane packing), f32 bias padded to an (8, lane_N) tile.
    fixed = _round_up(D, 16) * lane_N * in_itemsize + 8 * lane_N * 4
    budget = max(vmem_budget_bytes - fixed, 1 << 20)
    # Streamed, double-buffered tiles, bytes per 8 batch rows:
    #   f32 x tile (8, lane_D) + two f32 output tiles (8, lane_N), x2 buffers.
    per8 = 2 * (8 * lane_D * 4 + 2 * 8 * lane_N * 4)
    tb = (budget // per8) * 8
    tb = int(max(8, min(tb, 2048)))
    # Keep >= 2 batch tiles whenever B allows it so the "parallel" grid axis can
    # feed both v7x TensorCores (negligible cost on 1-TC v5e/v6e).
    tb = min(tb, max(8, _round_up(pl.cdiv(B, 2), 8)))
    return min(tb, _round_up(B, 8))


def _default_vmem_budget():
    """~60% of this generation's VMEM (v5e/v6e: ~77 MiB, v7x: ~38 MiB)."""
    try:
        cap = pltpu.get_tpu_info().vmem_capacity_bytes
    except Exception:
        cap = 64 * 1024 * 1024          # conservative (v7x per-TC) fallback
    return min(int(cap * 0.60), 96 * 1024 * 1024)


def categorical_forward(x, weight, bias, *, matmul_dtype=jnp.bfloat16,
                        probs_dtype=jnp.float32, vmem_budget_bytes=None):
    """x: (B, D), weight: (N, D) (PyTorch layout), bias: (N,).

    Returns (normalized_logits, probs) — the tensors that parameterize
    torch.distributions.Categorical(logits=Linear(x)).
    """
    B, D = x.shape
    N, D_w = weight.shape
    assert D_w == D and bias.shape == (N,)

    if vmem_budget_bytes is None:
        vmem_budget_bytes = _default_vmem_budget()

    in_itemsize = jnp.dtype(matmul_dtype).itemsize
    tb = _choose_batch_tile(B, D, N, in_itemsize, vmem_budget_bytes)
    num_tiles = pl.cdiv(B, tb)          # ragged last tile handled by Pallas (no pad)

    # One-time transpose of the static weight to MXU-canonical (D, N); amortized
    # across calls and avoids any per-grid-step transpose inside the kernel.
    w_in = weight.T.astype(matmul_dtype)                 # (D, N)
    b_in = bias.reshape(1, N).astype(jnp.float32)        # (1, N)
    x_in = x.astype(jnp.float32)                         # stays f32 in HBM

    out_shape = (
        jax.ShapeDtypeStruct((B, N), jnp.float32),
        jax.ShapeDtypeStruct((B, N), probs_dtype),
    )

    logits, probs = pl.pallas_call(
        _categorical_kernel,
        out_shape=out_shape,
        grid=(num_tiles,),
        in_specs=[
            # x: batch-tiled, double-buffered stream.
            pl.BlockSpec((tb, D), lambda i: (i, 0)),
            # weight / bias: constant index map -> VMEM-resident, single-buffered.
            pl.BlockSpec((D, N), lambda i: (0, 0), pipeline_mode=pl.Buffered(1)),
            pl.BlockSpec((1, N), lambda i: (0, 0), pipeline_mode=pl.Buffered(1)),
        ],
        out_specs=(
            pl.BlockSpec((tb, N), lambda i: (i, 0)),
            pl.BlockSpec((tb, N), lambda i: (i, 0)),
        ),
        compiler_params=pltpu.CompilerParams(
            dimension_semantics=("parallel",),           # batch tiles across TCs on v7x
            vmem_limit_bytes=int(vmem_budget_bytes),     # same number the tiler used
        ),
    )(x_in, w_in, b_in)
    return logits, probs


def orthogonal_init(key, rows, cols, gain=0.01):
    """Deterministic equivalent of nn.init.orthogonal_ with the given gain."""
    flat = jax.random.normal(key, (max(rows, cols), min(rows, cols)), jnp.float32)
    q, r = jnp.linalg.qr(flat)
    q = q * jnp.sign(jnp.diag(r))       # sign correction (torch convention)
    if rows < cols:
        q = q.T
    return gain * q[:rows, :cols]


if __name__ == "__main__":
    key = jax.random.PRNGKey(0)
    k_x, k_w = jax.random.split(key)

    B, num_inputs, num_outputs = 8, 32, 16

    x = jax.random.normal(k_x, (B, num_inputs), jnp.float32)
    weight = orthogonal_init(k_w, num_outputs, num_inputs, gain=0.01)  # (N, D)
    bias = jnp.zeros((num_outputs,), jnp.float32)                      # const 0

    logits, probs = categorical_forward(x, weight, bias)
    jax.block_until_ready((logits, probs))

    # Reference 1: same bf16 MXU operands / f32 accumulation as the kernel (tight tol).
    z_bf = jnp.dot(x.astype(jnp.bfloat16), weight.T.astype(jnp.bfloat16),
                   preferred_element_type=jnp.float32) + bias
    assert jnp.allclose(logits, jax.nn.log_softmax(z_bf, axis=-1), atol=1e-5)
    assert jnp.allclose(probs, jax.nn.softmax(z_bf, axis=-1), atol=1e-5)

    # Reference 2: full-f32 math (module semantics), loose tol covering bf16 inputs.
    z_f32 = x @ weight.T + bias
    assert jnp.allclose(logits, jax.nn.log_softmax(z_f32, axis=-1), atol=5e-3)
    assert jnp.allclose(probs, jax.nn.softmax(z_f32, axis=-1), atol=5e-3)

    # Distribution sanity: probs are a valid categorical distribution.
    assert jnp.allclose(jnp.sum(probs, axis=-1), 1.0, atol=1e-5)
    assert bool(jnp.all(probs >= 0.0))

    print("KERNEL_OK")
</pallas_src>

<mosaic_0001>
module attributes {stable_mosaic.version = 11 : i64} {
  func.func @_categorical_kernel(%arg0: i32, %arg1: memref<8x32xf32, #tpu.memory_space<vmem>>, %arg2: memref<32x16xbf16, #tpu.memory_space<vmem>>, %arg3: memref<1x16xf32, #tpu.memory_space<vmem>>, %arg4: memref<8x16xf32, #tpu.memory_space<vmem>>, %arg5: memref<8x16xf32, #tpu.memory_space<vmem>>) attributes {dimension_semantics = [#tpu.dimension_semantics<parallel>], iteration_bounds = array<i64: 1>, scalar_prefetch = 0 : i64, scratch_operands = 0 : i64, tpu.core_type = #tpu.core_type<tc>, window_params = [{transform_indices = @transform_0, window_bounds = array<i64: 8, 32>}, {pipeline_mode = #tpu.pipeline_mode<synchronous>, transform_indices = @transform_1, window_bounds = array<i64: 32, 16>}, {pipeline_mode = #tpu.pipeline_mode<synchronous>, transform_indices = @transform_2, window_bounds = array<i64: 1, 16>}, {transform_indices = @transform_3, window_bounds = array<i64: 8, 16>}, {transform_indices = @transform_4, window_bounds = array<i64: 8, 16>}]} {
    %c0 = arith.constant 0 : index
    %c0_0 = arith.constant 0 : index
    %0 = vector.load %arg1[%c0, %c0_0] : memref<8x32xf32, #tpu.memory_space<vmem>>, vector<8x32xf32>
    %1 = arith.truncf %0 : vector<8x32xf32> to vector<8x32xbf16>
    %c0_1 = arith.constant 0 : index
    %c0_2 = arith.constant 0 : index
    %2 = vector.load %arg2[%c0_1, %c0_2] : memref<32x16xbf16, #tpu.memory_space<vmem>>, vector<32x16xbf16>
    %c0_3 = arith.constant 0 : index
    %c0_4 = arith.constant 0 : index
    %3 = vector.load %arg3[%c0_3, %c0_4] : memref<1x16xf32, #tpu.memory_space<vmem>>, vector<1x16xf32>
    %cst = arith.constant dense<0.000000e+00> : vector<8x16xf32>
    %4 = tpu.matmul %1, %2, %cst {dimension_numbers = #tpu.dot_dimension_numbers<[1], [0], [0], [1], [0, 0, 1, 1], [], []>} : vector<8x32xbf16>, vector<32x16xbf16>, vector<8x16xf32> -> vector<8x16xf32>
    %5 = vector.broadcast %3 : vector<1x16xf32> to vector<8x16xf32>
    %6 = arith.addf %4, %5 : vector<8x16xf32>
    %cst_5 = arith.constant dense<0xFF800000> : vector<8xf32>
    %7 = vector.multi_reduction <maximumf>, %6, %cst_5 [1] : vector<8x16xf32> to vector<8xf32>
    %8 = vector.shape_cast %7 : vector<8xf32> to vector<8x1xf32>
    %9 = vector.broadcast %8 : vector<8x1xf32> to vector<8x16xf32>
    %10 = arith.subf %6, %9 : vector<8x16xf32>
    %11 = math.exp %10 : vector<8x16xf32>
    %cst_6 = arith.constant dense<0.000000e+00> : vector<8xf32>
    %12 = vector.multi_reduction <add>, %11, %cst_6 [1] : vector<8x16xf32> to vector<8xf32>
    %13 = vector.shape_cast %12 : vector<8xf32> to vector<8x1xf32>
    %14 = vector.broadcast %8 : vector<8x1xf32> to vector<8x16xf32>
    %15 = arith.subf %6, %14 : vector<8x16xf32>
    %16 = math.log %13 : vector<8x1xf32>
    %17 = vector.broadcast %16 : vector<8x1xf32> to vector<8x16xf32>
    %18 = arith.subf %15, %17 : vector<8x16xf32>
    %c0_7 = arith.constant 0 : index
    %c0_8 = arith.constant 0 : index
    %19 = vector.load %arg4[%c0_7, %c0_8] : memref<8x16xf32, #tpu.memory_space<vmem>>, vector<8x16xf32>
    tpu.vector_store %arg4[%c0_7, %c0_8], %18 {strides = array<i32>} : memref<8x16xf32, #tpu.memory_space<vmem>>, vector<8x16xf32>,
    %20 = vector.broadcast %13 : vector<8x1xf32> to vector<8x16xf32>
    %21 = arith.divf %11, %20 : vector<8x16xf32>
    %c0_9 = arith.constant 0 : index
    %c0_10 = arith.constant 0 : index
    %22 = vector.load %arg5[%c0_9, %c0_10] : memref<8x16xf32, #tpu.memory_space<vmem>>, vector<8x16xf32>
    tpu.vector_store %arg5[%c0_9, %c0_10], %21 {strides = array<i32>} : memref<8x16xf32, #tpu.memory_space<vmem>>, vector<8x16xf32>,
    return
  }
  func.func @transform_0(%arg0: i32) -> (i32, i32) {
    %c0_i32 = arith.constant 0 : i32
    %c0_i32_0 = arith.constant 0 : i32
    return %arg0, %c0_i32 : i32, i32
  }
  func.func @transform_1(%arg0: i32) -> (i32, i32) {
    %c0_i32 = arith.constant 0 : i32
    %c0_i32_0 = arith.constant 0 : i32
    %c0_i32_1 = arith.constant 0 : i32
    return %c0_i32, %c0_i32_0 : i32, i32
  }
  func.func @transform_2(%arg0: i32) -> (i32, i32) {
    %c0_i32 = arith.constant 0 : i32
    %c0_i32_0 = arith.constant 0 : i32
    %c0_i32_1 = arith.constant 0 : i32
    return %c0_i32, %c0_i32_0 : i32, i32
  }
  func.func @transform_3(%arg0: i32) -> (i32, i32) {
    %c0_i32 = arith.constant 0 : i32
    %c0_i32_0 = arith.constant 0 : i32
    return %arg0, %c0_i32 : i32, i32
  }
  func.func @transform_4(%arg0: i32) -> (i32, i32) {
    %c0_i32 = arith.constant 0 : i32
    %c0_i32_0 = arith.constant 0 : i32
    return %arg0, %c0_i32 : i32, i32
  }
}

</mosaic_0001>

<llo_original>
// kernel: tpu_custom_call.1
$region0: #{tpu_custom_call.1}
  #allocation0 [shape = 'u32[]', space=smem, size = 0x4, offset = 0x4, fixed_abs, tag = 'smem constant byte address 0x4 - core index']
  #allocation1 [shape = 'u32[72,128]{1,0:T(1,128)}', space=vmem, size = 0x9000, scoped, tag = 'internal scratch']
  %s0 = inlined_call_operand.vmem [shape: f32[8,32], index: 0, kind: input, shape index: {}]
  %s1 = inlined_call_operand.vmem [shape: bf16[32,16], index: 1, kind: input, shape index: {}]
  %s2 = inlined_call_operand.vmem [shape: f32[1,16], index: 2, kind: input, shape index: {}]
  %s3 = inlined_call_operand.hbm [shape: f32[8,16], index: 3, kind: output, shape index: {0}]
  %s4 = inlined_call_operand.hbm [shape: f32[8,16], index: 4, kind: output, shape index: {1}]
  %5 = xla_tuple %s3, %s4
  %s6 = sld [smem:[#allocation0]]
  $region30: #{tpu_custom_call.1} parent=0
    _
  %s8 = ssub.s32 1, %s6
  %s9 = scalar_select 0, %s8, %s6
  $region1: #{tpu_custom_call.1} parent=0
    #allocation2 [shape = 'u8[4096]{0}', space=vmem, size = 0x1000, scoped, tag = 'output window, operand 0, single buffered']
    #allocation3 [shape = 's32[1]{0}', space=sflag, size = 0x4, scoped, tag = 'scoped memory for tpu_custom_call.1']
    #allocation4 [shape = 'u8[4096]{0}', space=vmem, size = 0x1000, scoped, tag = 'output window, operand 1, single buffered']
    #allocation5 [shape = 's32[1]{0}', space=sflag, size = 0x4, scoped, tag = 'scoped memory for tpu_custom_call.1']
    %10 = vsyncpa [#allocation3], 0
    %11 = vsyncpa [#allocation5], 0
    // Predicated region
    $region2: #{tpu_custom_call.1} parent=1 // pred_check
      _
    $region3: #{tpu_custom_call.1} parent=1 // pred_check_branch
      %13 = sbr.rel (0) target = $region5
    $region4: #{tpu_custom_call.1} parent=1 // pred_region
      _
    $region5: #{tpu_custom_call.1} parent=1 // pred_fallthru
      _
    // Predicated region
    $region6: #{tpu_custom_call.1} parent=1 // pred_check
      _
    $region7: #{tpu_custom_call.1} parent=1 // pred_check_branch
      %15 = sbr.rel (0) target = $region9
    $region8: #{tpu_custom_call.1} parent=1 // pred_region
      _
    $region9: #{tpu_custom_call.1} parent=1 // pred_fallthru
      _
    // Predicated region
    $region10: #{tpu_custom_call.1} parent=1 // pred_check
      _
    $region11: #{tpu_custom_call.1} parent=1 // pred_check_branch
      %17 = sbr.rel (0) target = $region13
    $region12: #{tpu_custom_call.1} parent=1 // pred_region
      _
    $region13: #{tpu_custom_call.1} parent=1 // pred_fallthru
      _
    %v19 = vld [vmem:[%s0] sm:$0xff]
    %v20 = vpack.c.bf16 %v19, %v19
    %v21 = vld [vmem:[%s1] sm:$0xf]
    %v22 = vld [vmem:[%s1 + $0x4] sm:$0xf]
    %v23 = vld [vmem:[%s1 + $0x8] sm:$0xf]
    %v24 = vld [vmem:[%s1 + $0xc] sm:$0xf]
    %v25 = vld [vmem:[%s2] sm:$0x1]
    %v27 = vperm.slane %v25, 0
    %v33 = vunpack.c.l.b16 %v21
    %v34 = vunpack.c.l.b16 %v22
    %v35 = vunpack.c.l.b16 %v23
    %v36 = vunpack.c.l.b16 %v24
    %v37 = vpack.c.b16 %v34, %v33
    %v38 = vpack.c.b16 %v36, %v35
    %vm41 = vcmask 261120
    %v43 = vsel %vm41, %v20, 0
    %45 = vmatpush.bf16.msra.mxu0 0
    %46 = vmatpush.bf16.msra.mxu0 0
    %47 = vmatpush.bf16.msra.mxu0 0
    %48 = vmatpush.bf16.msra.mxu0 0
    %49 = vmatpush.bf16.msra.mxu0 0
    %50 = vmatpush.bf16.msra.mxu0 0
    %51 = vmatpush.bf16.msra.mxu0 %v38
    %52 = vmatpush.bf16.msra.mxu0 %v37
    %53 = vmatmul.bf16.gmra.mxu0 %v43
    %v54 = vpop.f32.mrf.mxu0
    %v55 = vadd.f32 %v27, %v54
    %v56 = vpop.f32.mrf.mxu0
    %57 = vdwg.mxu0
    %vm58 = vcmask 130048
    %v59 = vsel %vm58, %v55, -inf
    %60 = vmax.xlane.f32.xlu0 %v59
    %v61 = vpop.xlane.xlu0 %60
    %v62 = vsub.f32 %v55, %v61
    %v63 = vmul.f32 %v62, 1.442695
    %v64 = vpow.pop %v63
    %v65 = vsel %vm58, %v64, 0.0
    %66 = vadd.xlane.f32.xlu0 %v65
    %v67 = vpop.xlane.xlu0 %66
    %v68 = vlog2.pop %v67
    %v69 = vmul.f32 %v68, 0.6931472
    %v70 = vsub.f32 %v62, %v69
    %71 = vst.msk [vmem:[#allocation2] sm:$0xff] %vm58, %v70
    %v72 = vrcp.pop %v67
    %v73 = vmul.f32 %v67, %v72
    %v74 = vsub.f32 1.0, %v73
    %v75 = vmul.f32 %v72, %v74
    %v76 = vadd.f32 %v72, %v75
    %vm77 = vweird.f32 %v67
    %vm78 = vweird.f32 %v72
    %vm79 = vmor %vm77, %vm78
    %v80 = vsel %vm79, %v72, %v76
    %v81 = vand.u32 2147483647, %v67
    %vm82 = vcmp.eq.f32.partialorder %v81, 8.507059e+37
    %v83 = vand.u32 %v67, 2147483648
    %v84 = vor.u32 1.1754944e-38, %v83
    %v85 = vsel %vm82, %v84, %v80
    %v86 = vmul.f32 %v64, %v85
    %87 = vst.msk [vmem:[#allocation4] sm:$0xff] %vm58, %v86
    // Predicated region
    $region14: #{tpu_custom_call.1} parent=1 // pred_check
      _
    $region15: #{tpu_custom_call.1} parent=1 // pred_check_branch
      %89 = sbr.rel (0) target = $region17
    $region16: #{tpu_custom_call.1} parent=1 // pred_region
      %91 = vsyncadd [#allocation3], 0
      %s93 = sshll.u32 [#allocation2], 4
      %s94 = int_to_ptr.vmem [resolvable:$true] %s93
      %s95 = sshll.u32 %s3, 4
      %s96 = int_to_ptr.hbm [resolvable:$true] %s95
      %98 = dma.vmem_to_hbm [thread:$0]  %s94, 128, %s96, [#allocation3]
    $region17: #{tpu_custom_call.1} parent=1 // pred_fallthru
      _
    // Predicated region
    $region18: #{tpu_custom_call.1} parent=1 // pred_check
      _
    $region19: #{tpu_custom_call.1} parent=1 // pred_check_branch
      %100 = sbr.rel (0) target = $region21
    $region20: #{tpu_custom_call.1} parent=1 // pred_region
      %102 = vsyncadd [#allocation5], 0
      %s104 = sshll.u32 [#allocation4], 4
      %s105 = int_to_ptr.vmem [resolvable:$true] %s104
      %s106 = sshll.u32 %s4, 4
      %s107 = int_to_ptr.hbm [resolvable:$true] %s106
      %109 = dma.vmem_to_hbm [thread:$0]  %s105, 128, %s107, [#allocation5]
    $region21: #{tpu_custom_call.1} parent=1 // pred_fallthru
      _
    // Predicated region
    $region22: #{tpu_custom_call.1} parent=1 // pred_check
      _
    $region23: #{tpu_custom_call.1} parent=1 // pred_check_branch
      %111 = sbr.rel (0) target = $region25
    $region24: #{tpu_custom_call.1} parent=1 // pred_region
      %113 = dma.done [#allocation3], 128
    $region25: #{tpu_custom_call.1} parent=1 // pred_fallthru
      _
    // Predicated region
    $region26: #{tpu_custom_call.1} parent=1 // pred_check
      _
    $region27: #{tpu_custom_call.1} parent=1 // pred_check_branch
      %115 = sbr.rel (0) target = $region29
    $region28: #{tpu_custom_call.1} parent=1 // pred_region
      %117 = dma.done [#allocation5], 128
    $region29: #{tpu_custom_call.1} parent=1 // pred_fallthru
      _
    %118 = vsyncpa [#allocation3], 1
    %119 = vsyncpa [#allocation5], 1

</llo_original>
